<compile_context>
chip_gen: v5e
topology: v5e:2x2
jax: 0.10.0
libtpu: 0.0.40
codegen_flags: <defaults>
</compile_context>

<pallas_src>
import jax
import jax.numpy as jnp
from jax.experimental import pallas as pl
from jax.experimental.pallas import tpu as pltpu

C1 = 32      # conv1 output channels
C2 = 64      # conv2 output channels
KW = 5       # conv kernel width
KW_PAD = 8   # conv1 tap-slab lanes (5 taps zero-padded to 8)
PAD = 2      # conv "same" padding
FC1 = 128    # fc1 hidden width (also the lane-dense output width)


def _make_kernel(B, L):
    L2 = L // 2
    L4 = L // 4
    R2 = B * L2          # rows after maxpool1 == conv2 rows (position-major: row = pos*B + b)

    def kernel(x1_ref, w1_ref, w2_ref, wfc1_ref, wfc2_ref, bias_ref, out_ref):
        f32 = jnp.float32
        bf16 = jnp.bfloat16

        # ---- conv1 (1 -> 32): one K=8 MXU dot over the wrapper-built tap slab -------
        h1 = jnp.dot(x1_ref[...].astype(bf16), w1_ref[...],
                     preferred_element_type=f32)                       # (B*L, C1)
        h1 = jnp.maximum(h1 + bias_ref[0:1, 0:C1], 0.0)

        # ---- maxpool1 (k=2,s=2): even-position block vs odd-position block ----------
        # (the wrapper orders slab rows [all even positions ; all odd positions],
        #  both position-major, so the pool is a max of two contiguous halves)
        p1 = jnp.maximum(h1[:R2, :], h1[R2:, :])                       # (B*L2, C1), row = t*B+b

        # ---- conv2 (32 -> 64): one K=KW*C1=160 MXU dot over an in-kernel im2col slab -
        # Position-major layout turns per-sample "same" padding into two global
        # zero-row blocks; each tap is then a contiguous, sublane-aligned row slice.
        zpad = jnp.zeros((PAD * B, C1), f32)
        p1pad = jnp.concatenate([zpad, p1, zpad], axis=0)              # ((L2+2*PAD)*B, C1)
        slab = jnp.concatenate(
            [p1pad[k * B:k * B + R2, :] for k in range(KW)], axis=-1)  # (B*L2, KW*C1)
        h2 = jnp.dot(slab.astype(bf16), w2_ref[...],
                     preferred_element_type=f32)                       # (B*L2, C2), row = u*B+b
        h2 = jnp.maximum(h2 + bias_ref[1:2, 0:C2], 0.0)

        # ---- maxpool2 + channel-major flatten + fc1 (fused) + ReLU -------------------
        # Adjacent conv2 positions are adjacent B-row blocks; their max is directly the
        # (B, C2) pooled feature block at position p, so lane-concatenation over p gives
        # the (B, L4*C2) fc1 operand with rows = samples (no strides, no reshapes).
        feats = jnp.concatenate(
            [jnp.maximum(h2[(2 * p) * B:(2 * p + 1) * B, :],
                         h2[(2 * p + 1) * B:(2 * p + 2) * B, :]) for p in range(L4)],
            axis=-1)                                                   # (B, L4*C2)
        hf = jnp.dot(feats.astype(bf16), wfc1_ref[...],
                     preferred_element_type=f32)                       # (B, FC1)
        hf = jnp.maximum(hf + bias_ref[2:3, :], 0.0)
        # Dropout(0.5): eval-mode identity.

        # ---- fc2 (lane-dense, padded to 128 output lanes) ----------------------------
        out_ref[...] = (jnp.dot(hf.astype(bf16), wfc2_ref[...],
                                preferred_element_type=f32)
                        + bias_ref[3:4, :])

    return kernel


def prepare_params(params):
    """One-time weight re-layout + bf16 cast (call once, OUTSIDE the per-call jit path)."""
    num_classes = params["wfc2"].shape[0]
    assert num_classes <= FC1
    L4 = params["wfc1"].shape[1] // C2

    # conv1: (C1,1,KW) -> (KW_PAD, C1), rows >= KW are zero (match the zero-padded slab lanes).
    w1p = (jnp.zeros((KW_PAD, C1), jnp.float32)
           .at[:KW, :].set(jnp.transpose(params["w1"][:, 0, :], (1, 0))))
    # conv2: (C2,C1,KW) -> (KW*C1, C2), slab lane index = k*C1 + ci.
    w2p = jnp.transpose(params["w2"], (2, 1, 0)).reshape(KW * C1, C2)
    # fc1: PyTorch flatten index is c*L4 + p; our feats lane index is p*C2 + c.
    wfc1p = jnp.transpose(params["wfc1"].reshape(FC1, C2, L4), (2, 1, 0)).reshape(L4 * C2, FC1)
    # fc2: zero-padded to 128 output lanes (lane-dense kernel output).
    wfc2p = jnp.zeros((FC1, FC1), jnp.float32).at[:, :num_classes].set(params["wfc2"].T)
    biases = (jnp.zeros((4, FC1), jnp.float32)
              .at[0, :C1].set(params["b1"])
              .at[1, :C2].set(params["b2"])
              .at[2, :].set(params["bfc1"])
              .at[3, :num_classes].set(params["bfc2"]))
    return {
        "w1p": w1p.astype(jnp.bfloat16),
        "w2p": w2p.astype(jnp.bfloat16),
        "wfc1p": wfc1p.astype(jnp.bfloat16),
        "wfc2p": wfc2p.astype(jnp.bfloat16),
        "biases": biases,
    }


def spectral_cnn_forward(prepped, x, num_classes):
    """SpectralCNN forward as one Pallas TPU kernel call (prepped = prepare_params(params))."""
    B, L = x.shape
    assert L % 4 == 0, "input_size must be divisible by 4 (two MaxPool1d(2) stages)"
    L2, L4 = L // 2, L // 4

    # conv1 im2col slab (input layout plumbing; the conv arithmetic stays in-kernel):
    # rows = [even output positions ; odd output positions], each block position-major
    # (row = t*B + b), lanes = 5 taps zero-padded to 8.  Per-sample zero padding is
    # baked in here, so the kernel needs no masks.
    xp = jnp.pad(x, ((0, 0), (PAD, PAD)))                                # (B, L+4)
    cols = jnp.stack([xp[:, k:k + L] for k in range(KW)], axis=-1)       # (B, L, KW)
    even = jnp.transpose(cols[:, 0::2, :], (1, 0, 2)).reshape(B * L2, KW)
    odd = jnp.transpose(cols[:, 1::2, :], (1, 0, 2)).reshape(B * L2, KW)
    x1 = jnp.pad(jnp.concatenate([even, odd], axis=0),
                 ((0, 0), (0, KW_PAD - KW)))                             # (B*L, 8) f32

    flops = 2 * (B * L * KW_PAD * C1 + B * L2 * (KW * C1) * C2
                 + B * (L4 * C2) * FC1 + B * FC1 * FC1)
    bytes_accessed = int(
        x1.size * 4
        + sum(int(prepped[k].size) * prepped[k].dtype.itemsize
              for k in ("w1p", "w2p", "wfc1p", "wfc2p", "biases"))
        + B * FC1 * 4)

    vmem = pl.BlockSpec(memory_space=pltpu.MemorySpace.VMEM)
    out = pl.pallas_call(
        _make_kernel(B, L),
        out_shape=jax.ShapeDtypeStruct((B, FC1), jnp.float32),
        in_specs=[vmem] * 6,
        out_specs=vmem,
        cost_estimate=pl.CostEstimate(flops=int(flops), transcendentals=0,
                                      bytes_accessed=bytes_accessed),
    )(x1, prepped["w1p"], prepped["w2p"], prepped["wfc1p"], prepped["wfc2p"],
      prepped["biases"])
    return out[:, :num_classes]


def init_params(key, input_size, num_classes):
    """Random parameters, stored in PyTorch layouts."""
    L4 = input_size // 4
    fc_in = C2 * L4
    ks = jax.random.split(key, 8)

    def nrm(k, shape, std):
        return (std * jax.random.normal(k, shape)).astype(jnp.float32)

    return {
        "w1":   nrm(ks[0], (C1, 1, KW), 0.30),        # Conv1d(1,32,5) weight
        "b1":   nrm(ks[1], (C1,), 0.10),
        "w2":   nrm(ks[2], (C2, C1, KW), 0.08),       # Conv1d(32,64,5) weight
        "b2":   nrm(ks[3], (C2,), 0.10),
        "wfc1": nrm(ks[4], (FC1, fc_in), 0.05),       # Linear(fc_in,128) weight
        "bfc1": nrm(ks[5], (FC1,), 0.10),
        "wfc2": nrm(ks[6], (num_classes, FC1), 0.08), # Linear(128,num_classes) weight
        "bfc2": nrm(ks[7], (num_classes,), 0.10),
    }


def reference(params, x):
    """Plain-JAX (f32) mirror of the PyTorch forward (eval mode), for validation."""
    B, L = x.shape
    L2, L4 = L // 2, L // 4
    xp = jnp.pad(x, ((0, 0), (PAD, PAD)))
    col1 = jnp.stack([xp[:, k:k + L] for k in range(KW)], axis=-1)           # (B,L,KW)
    y1 = jnp.einsum("blk,ck->bcl", col1, params["w1"][:, 0, :]) + params["b1"][None, :, None]
    y1 = jnp.maximum(y1, 0.0)
    p1 = jnp.max(y1.reshape(B, C1, L2, 2), axis=-1)                          # MaxPool1d(2)
    p1p = jnp.pad(p1, ((0, 0), (0, 0), (PAD, PAD)))
    col2 = jnp.stack([p1p[:, :, k:k + L2] for k in range(KW)], axis=-1)      # (B,C1,L2,KW)
    y2 = jnp.einsum("bclk,dck->bdl", col2, params["w2"]) + params["b2"][None, :, None]
    y2 = jnp.maximum(y2, 0.0)
    p2 = jnp.max(y2.reshape(B, C2, L4, 2), axis=-1)                          # (B,C2,L4)
    flat = p2.reshape(B, C2 * L4)                                            # PyTorch .view order
    h = jnp.maximum(flat @ params["wfc1"].T + params["bfc1"], 0.0)
    return h @ params["wfc2"].T + params["bfc2"]                             # dropout = identity


if __name__ == "__main__":
    key = jax.random.PRNGKey(0)
    input_size = 32     # spectrum length L
    num_classes = 10
    B = 8               # batch size

    pkey, xkey = jax.random.split(key)
    params = init_params(pkey, input_size, num_classes)
    x = jax.random.normal(xkey, (B, input_size), dtype=jnp.float32)

    prepped = prepare_params(params)                    # one-time weight packing / bf16 cast
    fwd = jax.jit(lambda pp, xx: spectral_cnn_forward(pp, xx, num_classes))
    out = fwd(prepped, x)
    jax.block_until_ready(out)

    ref = reference(params, x)
    assert out.shape == (B, num_classes)
    # bf16 MXU operands (f32 accumulate) -> compare against the f32 reference with a
    # correspondingly looser tolerance; layout/permutation bugs would be O(1) errors.
    assert jnp.allclose(out, ref, atol=5e-2, rtol=5e-2), "mismatch vs plain-JAX reference"
    print("KERNEL_OK")
</pallas_src>

<mosaic_0001>
module attributes {stable_mosaic.version = 11 : i64} {
  func.func @kernel(%arg0: memref<256x8xf32, #tpu.memory_space<vmem>>, %arg1: memref<8x32xbf16, #tpu.memory_space<vmem>>, %arg2: memref<160x64xbf16, #tpu.memory_space<vmem>>, %arg3: memref<512x128xbf16, #tpu.memory_space<vmem>>, %arg4: memref<128x128xbf16, #tpu.memory_space<vmem>>, %arg5: memref<4x128xf32, #tpu.memory_space<vmem>>, %arg6: memref<8x128xf32, #tpu.memory_space<vmem>>) attributes {dimension_semantics = [], scalar_prefetch = 0 : i64, scratch_operands = 0 : i64, tpu.core_type = #tpu.core_type<tc>} {
    %c0 = arith.constant 0 : index
    %c0_0 = arith.constant 0 : index
    %0 = vector.load %arg0[%c0, %c0_0] : memref<256x8xf32, #tpu.memory_space<vmem>>, vector<256x8xf32>
    %1 = arith.truncf %0 : vector<256x8xf32> to vector<256x8xbf16>
    %c0_1 = arith.constant 0 : index
    %c0_2 = arith.constant 0 : index
    %2 = vector.load %arg1[%c0_1, %c0_2] : memref<8x32xbf16, #tpu.memory_space<vmem>>, vector<8x32xbf16>
    %cst = arith.constant dense<0.000000e+00> : vector<256x32xf32>
    %3 = tpu.matmul %1, %2, %cst {dimension_numbers = #tpu.dot_dimension_numbers<[1], [0], [0], [1], [0, 0, 1, 1], [], []>} : vector<256x8xbf16>, vector<8x32xbf16>, vector<256x32xf32> -> vector<256x32xf32>
    %c0_3 = arith.constant 0 : index
    %c0_4 = arith.constant 0 : index
    %4 = vector.load %arg5[%c0_3, %c0_4] : memref<4x128xf32, #tpu.memory_space<vmem>>, vector<1x32xf32>
    %5 = vector.broadcast %4 : vector<1x32xf32> to vector<256x32xf32>
    %6 = arith.addf %3, %5 : vector<256x32xf32>
    %cst_5 = arith.constant 0.000000e+00 : f32
    %7 = vector.broadcast %cst_5 : f32 to vector<256x32xf32>
    %8 = arith.maximumf %6, %7 : vector<256x32xf32>
    %9 = vector.extract_strided_slice %8 {offsets = [0, 0], sizes = [128, 32], strides = [1, 1]} : vector<256x32xf32> to vector<128x32xf32>
    %10 = vector.extract_strided_slice %8 {offsets = [128, 0], sizes = [128, 32], strides = [1, 1]} : vector<256x32xf32> to vector<128x32xf32>
    %11 = arith.maximumf %9, %10 : vector<128x32xf32>
    %cst_6 = arith.constant 0.000000e+00 : f32
    %12 = vector.broadcast %cst_6 : f32 to vector<16x32xf32>
    %13 = tpu.concatenate %12, %11, %12 in 0 : vector<16x32xf32>, vector<128x32xf32>, vector<16x32xf32> -> vector<160x32xf32>
    %14 = vector.extract_strided_slice %13 {offsets = [0, 0], sizes = [128, 32], strides = [1, 1]} : vector<160x32xf32> to vector<128x32xf32>
    %15 = vector.extract_strided_slice %13 {offsets = [8, 0], sizes = [128, 32], strides = [1, 1]} : vector<160x32xf32> to vector<128x32xf32>
    %16 = vector.extract_strided_slice %13 {offsets = [16, 0], sizes = [128, 32], strides = [1, 1]} : vector<160x32xf32> to vector<128x32xf32>
    %17 = vector.extract_strided_slice %13 {offsets = [24, 0], sizes = [128, 32], strides = [1, 1]} : vector<160x32xf32> to vector<128x32xf32>
    %18 = vector.extract_strided_slice %13 {offsets = [32, 0], sizes = [128, 32], strides = [1, 1]} : vector<160x32xf32> to vector<128x32xf32>
    %19 = tpu.concatenate %14, %15, %16, %17, %18 in 1 : vector<128x32xf32>, vector<128x32xf32>, vector<128x32xf32>, vector<128x32xf32>, vector<128x32xf32> -> vector<128x160xf32>
    %20 = arith.truncf %19 : vector<128x160xf32> to vector<128x160xbf16>
    %c0_7 = arith.constant 0 : index
    %c0_8 = arith.constant 0 : index
    %21 = vector.load %arg2[%c0_7, %c0_8] : memref<160x64xbf16, #tpu.memory_space<vmem>>, vector<160x64xbf16>
    %cst_9 = arith.constant dense<0.000000e+00> : vector<128x64xf32>
    %22 = tpu.matmul %20, %21, %cst_9 {dimension_numbers = #tpu.dot_dimension_numbers<[1], [0], [0], [1], [0, 0, 1, 1], [], []>} : vector<128x160xbf16>, vector<160x64xbf16>, vector<128x64xf32> -> vector<128x64xf32>
    %c1 = arith.constant 1 : index
    %c0_10 = arith.constant 0 : index
    %23 = vector.load %arg5[%c1, %c0_10] : memref<4x128xf32, #tpu.memory_space<vmem>>, vector<1x64xf32>
    %24 = vector.broadcast %23 : vector<1x64xf32> to vector<128x64xf32>
    %25 = arith.addf %22, %24 : vector<128x64xf32>
    %cst_11 = arith.constant 0.000000e+00 : f32
    %26 = vector.broadcast %cst_11 : f32 to vector<128x64xf32>
    %27 = arith.maximumf %25, %26 : vector<128x64xf32>
    %28 = vector.extract_strided_slice %27 {offsets = [0, 0], sizes = [8, 64], strides = [1, 1]} : vector<128x64xf32> to vector<8x64xf32>
    %29 = vector.extract_strided_slice %27 {offsets = [8, 0], sizes = [8, 64], strides = [1, 1]} : vector<128x64xf32> to vector<8x64xf32>
    %30 = arith.maximumf %28, %29 : vector<8x64xf32>
    %31 = vector.extract_strided_slice %27 {offsets = [16, 0], sizes = [8, 64], strides = [1, 1]} : vector<128x64xf32> to vector<8x64xf32>
    %32 = vector.extract_strided_slice %27 {offsets = [24, 0], sizes = [8, 64], strides = [1, 1]} : vector<128x64xf32> to vector<8x64xf32>
    %33 = arith.maximumf %31, %32 : vector<8x64xf32>
    %34 = vector.extract_strided_slice %27 {offsets = [32, 0], sizes = [8, 64], strides = [1, 1]} : vector<128x64xf32> to vector<8x64xf32>
    %35 = vector.extract_strided_slice %27 {offsets = [40, 0], sizes = [8, 64], strides = [1, 1]} : vector<128x64xf32> to vector<8x64xf32>
    %36 = arith.maximumf %34, %35 : vector<8x64xf32>
    %37 = vector.extract_strided_slice %27 {offsets = [48, 0], sizes = [8, 64], strides = [1, 1]} : vector<128x64xf32> to vector<8x64xf32>
    %38 = vector.extract_strided_slice %27 {offsets = [56, 0], sizes = [8, 64], strides = [1, 1]} : vector<128x64xf32> to vector<8x64xf32>
    %39 = arith.maximumf %37, %38 : vector<8x64xf32>
    %40 = vector.extract_strided_slice %27 {offsets = [64, 0], sizes = [8, 64], strides = [1, 1]} : vector<128x64xf32> to vector<8x64xf32>
    %41 = vector.extract_strided_slice %27 {offsets = [72, 0], sizes = [8, 64], strides = [1, 1]} : vector<128x64xf32> to vector<8x64xf32>
    %42 = arith.maximumf %40, %41 : vector<8x64xf32>
    %43 = vector.extract_strided_slice %27 {offsets = [80, 0], sizes = [8, 64], strides = [1, 1]} : vector<128x64xf32> to vector<8x64xf32>
    %44 = vector.extract_strided_slice %27 {offsets = [88, 0], sizes = [8, 64], strides = [1, 1]} : vector<128x64xf32> to vector<8x64xf32>
    %45 = arith.maximumf %43, %44 : vector<8x64xf32>
    %46 = vector.extract_strided_slice %27 {offsets = [96, 0], sizes = [8, 64], strides = [1, 1]} : vector<128x64xf32> to vector<8x64xf32>
    %47 = vector.extract_strided_slice %27 {offsets = [104, 0], sizes = [8, 64], strides = [1, 1]} : vector<128x64xf32> to vector<8x64xf32>
    %48 = arith.maximumf %46, %47 : vector<8x64xf32>
    %49 = vector.extract_strided_slice %27 {offsets = [112, 0], sizes = [8, 64], strides = [1, 1]} : vector<128x64xf32> to vector<8x64xf32>
    %50 = vector.extract_strided_slice %27 {offsets = [120, 0], sizes = [8, 64], strides = [1, 1]} : vector<128x64xf32> to vector<8x64xf32>
    %51 = arith.maximumf %49, %50 : vector<8x64xf32>
    %52 = tpu.concatenate %30, %33, %36, %39, %42, %45, %48, %51 in 1 : vector<8x64xf32>, vector<8x64xf32>, vector<8x64xf32>, vector<8x64xf32>, vector<8x64xf32>, vector<8x64xf32>, vector<8x64xf32>, vector<8x64xf32> -> vector<8x512xf32>
    %53 = arith.truncf %52 : vector<8x512xf32> to vector<8x512xbf16>
    %c0_12 = arith.constant 0 : index
    %c0_13 = arith.constant 0 : index
    %54 = vector.load %arg3[%c0_12, %c0_13] : memref<512x128xbf16, #tpu.memory_space<vmem>>, vector<512x128xbf16>
    %cst_14 = arith.constant dense<0.000000e+00> : vector<8x128xf32>
    %55 = tpu.matmul %53, %54, %cst_14 {dimension_numbers = #tpu.dot_dimension_numbers<[1], [0], [0], [1], [0, 0, 1, 1], [], []>} : vector<8x512xbf16>, vector<512x128xbf16>, vector<8x128xf32> -> vector<8x128xf32>
    %c2 = arith.constant 2 : index
    %c0_15 = arith.constant 0 : index
    %56 = vector.load %arg5[%c2, %c0_15] : memref<4x128xf32, #tpu.memory_space<vmem>>, vector<1x128xf32>
    %57 = vector.broadcast %56 : vector<1x128xf32> to vector<8x128xf32>
    %58 = arith.addf %55, %57 : vector<8x128xf32>
    %cst_16 = arith.constant 0.000000e+00 : f32
    %59 = vector.broadcast %cst_16 : f32 to vector<8x128xf32>
    %60 = arith.maximumf %58, %59 : vector<8x128xf32>
    %61 = arith.truncf %60 : vector<8x128xf32> to vector<8x128xbf16>
    %c0_17 = arith.constant 0 : index
    %c0_18 = arith.constant 0 : index
    %62 = vector.load %arg4[%c0_17, %c0_18] : memref<128x128xbf16, #tpu.memory_space<vmem>>, vector<128x128xbf16>
    %cst_19 = arith.constant dense<0.000000e+00> : vector<8x128xf32>
    %63 = tpu.matmul %61, %62, %cst_19 {dimension_numbers = #tpu.dot_dimension_numbers<[1], [0], [0], [1], [0, 0, 1, 1], [], []>} : vector<8x128xbf16>, vector<128x128xbf16>, vector<8x128xf32> -> vector<8x128xf32>
    %c3 = arith.constant 3 : index
    %c0_20 = arith.constant 0 : index
    %64 = vector.load %arg5[%c3, %c0_20] : memref<4x128xf32, #tpu.memory_space<vmem>>, vector<1x128xf32>
    %65 = vector.broadcast %64 : vector<1x128xf32> to vector<8x128xf32>
    %66 = arith.addf %63, %65 : vector<8x128xf32>
    %c0_21 = arith.constant 0 : index
    %c0_22 = arith.constant 0 : index
    %67 = vector.load %arg6[%c0_21, %c0_22] : memref<8x128xf32, #tpu.memory_space<vmem>>, vector<8x128xf32>
    tpu.vector_store %arg6[%c0_21, %c0_22], %66 {strides = array<i32>} : memref<8x128xf32, #tpu.memory_space<vmem>>, vector<8x128xf32>,
    return
  }
}

</mosaic_0001>

<llo_original>
// kernel: _lambda_.1
$region0: #{_lambda_.1}
  #allocation0 [shape = 'u32[]', space=smem, size = 0x4, offset = 0x4, fixed_abs, tag = 'smem constant byte address 0x4 - core index']
  #allocation1 [shape = 'u32[72,128]{1,0:T(1,128)}', space=vmem, size = 0x9000, scoped, tag = 'internal scratch']
  %s0 = inlined_call_operand.vmem [shape: f32[256,8], index: 0, kind: input, shape index: {}]
  %s1 = inlined_call_operand.vmem [shape: bf16[8,32], index: 1, kind: input, shape index: {}]
  %s2 = inlined_call_operand.vmem [shape: bf16[160,64], index: 2, kind: input, shape index: {}]
  %s3 = inlined_call_operand.vmem [shape: bf16[512,128], index: 3, kind: input, shape index: {}]
  %s4 = inlined_call_operand.vmem [shape: bf16[128,128], index: 4, kind: input, shape index: {}]
  %s5 = inlined_call_operand.vmem [shape: f32[4,128], index: 5, kind: input, shape index: {}]
  %s6 = inlined_call_operand.hbm [shape: f32[8,128], index: 6, kind: output, shape index: {}]
  %s7 = sld [smem:[#allocation0]]
  $region34: #{_lambda_.1} parent=0
    _
  %s9 = ssub.s32 1, %s7
  %s10 = scalar_select 0, %s9, %s7
  $region1: #{_lambda_.1} parent=0
    #allocation2 [shape = 'u8[4096]{0}', space=vmem, size = 0x1000, scoped, tag = 'output window, operand 0, single buffered']
    #allocation3 [shape = 's32[1]{0}', space=sflag, size = 0x4, scoped, tag = 'scoped memory for _lambda_.1']
    %11 = vsyncpa [#allocation3], 0
    // Predicated region
    $region2: #{_lambda_.1} parent=1 // pred_check
      _
    $region3: #{_lambda_.1} parent=1 // pred_check_branch
      %13 = sbr.rel (0) target = $region5
    $region4: #{_lambda_.1} parent=1 // pred_region
      _
    $region5: #{_lambda_.1} parent=1 // pred_fallthru
      _
    // Predicated region
    $region6: #{_lambda_.1} parent=1 // pred_check
      _
    $region7: #{_lambda_.1} parent=1 // pred_check_branch
      %15 = sbr.rel (0) target = $region9
    $region8: #{_lambda_.1} parent=1 // pred_region
      _
    $region9: #{_lambda_.1} parent=1 // pred_fallthru
      _
    // Predicated region
    $region10: #{_lambda_.1} parent=1 // pred_check
      _
    $region11: #{_lambda_.1} parent=1 // pred_check_branch
      %17 = sbr.rel (0) target = $region13
    $region12: #{_lambda_.1} parent=1 // pred_region
      _
    $region13: #{_lambda_.1} parent=1 // pred_fallthru
      _
    // Predicated region
    $region14: #{_lambda_.1} parent=1 // pred_check
      _
    $region15: #{_lambda_.1} parent=1 // pred_check_branch
      %19 = sbr.rel (0) target = $region17
    $region16: #{_lambda_.1} parent=1 // pred_region
      _
    $region17: #{_lambda_.1} parent=1 // pred_fallthru
      _
    // Predicated region
    $region18: #{_lambda_.1} parent=1 // pred_check
      _
    $region19: #{_lambda_.1} parent=1 // pred_check_branch
      %21 = sbr.rel (0) target = $region21
    $region20: #{_lambda_.1} parent=1 // pred_region
      _
    $region21: #{_lambda_.1} parent=1 // pred_fallthru
      _
    // Predicated region
    $region22: #{_lambda_.1} parent=1 // pred_check
      _
    $region23: #{_lambda_.1} parent=1 // pred_check_branch
      %23 = sbr.rel (0) target = $region25
    $region24: #{_lambda_.1} parent=1 // pred_region
      _
    $region25: #{_lambda_.1} parent=1 // pred_fallthru
      _
    %v25 = vld [vmem:[%s0] sm:$0xff]
    %v26 = vld [vmem:[%s0 + $0x8] sm:$0xff]
    %v27 = vld [vmem:[%s0 + $0x10] sm:$0xff]
    %v28 = vld [vmem:[%s0 + $0x18] sm:$0xff]
    %v29 = vld [vmem:[%s0 + $0x20] sm:$0xff]
    %v30 = vld [vmem:[%s0 + $0x28] sm:$0xff]
    %v31 = vld [vmem:[%s0 + $0x30] sm:$0xff]
    %v32 = vld [vmem:[%s0 + $0x38] sm:$0xff]
    %v33 = vld [vmem:[%s0 + $0x40] sm:$0xff]
    %v34 = vld [vmem:[%s0 + $0x48] sm:$0xff]
    %v35 = vld [vmem:[%s0 + $0x50] sm:$0xff]
    %v36 = vld [vmem:[%s0 + $0x58] sm:$0xff]
    %v37 = vld [vmem:[%s0 + $0x60] sm:$0xff]
    %v38 = vld [vmem:[%s0 + $0x68] sm:$0xff]
    %v39 = vld [vmem:[%s0 + $0x70] sm:$0xff]
    %v40 = vld [vmem:[%s0 + $0x78] sm:$0xff]
    %v41 = vld [vmem:[%s0 + $0x80] sm:$0xff]
    %v42 = vld [vmem:[%s0 + $0x88] sm:$0xff]
    %v43 = vld [vmem:[%s0 + $0x90] sm:$0xff]
    %v44 = vld [vmem:[%s0 + $0x98] sm:$0xff]
    %v45 = vld [vmem:[%s0 + $0xa0] sm:$0xff]
    %v46 = vld [vmem:[%s0 + $0xa8] sm:$0xff]
    %v47 = vld [vmem:[%s0 + $0xb0] sm:$0xff]
    %v48 = vld [vmem:[%s0 + $0xb8] sm:$0xff]
    %v49 = vld [vmem:[%s0 + $0xc0] sm:$0xff]
    %v50 = vld [vmem:[%s0 + $0xc8] sm:$0xff]
    %v51 = vld [vmem:[%s0 + $0xd0] sm:$0xff]
    %v52 = vld [vmem:[%s0 + $0xd8] sm:$0xff]
    %v53 = vld [vmem:[%s0 + $0xe0] sm:$0xff]
    %v54 = vld [vmem:[%s0 + $0xe8] sm:$0xff]
    %v55 = vld [vmem:[%s0 + $0xf0] sm:$0xff]
    %v56 = vld [vmem:[%s0 + $0xf8] sm:$0xff]
    %v57 = vpack.c.bf16 %v26, %v25
    %v58 = vpack.c.bf16 %v28, %v27
    %v59 = vpack.c.bf16 %v30, %v29
    %v60 = vpack.c.bf16 %v32, %v31
    %v61 = vpack.c.bf16 %v34, %v33
    %v62 = vpack.c.bf16 %v36, %v35
    %v63 = vpack.c.bf16 %v38, %v37
    %v64 = vpack.c.bf16 %v40, %v39
    %v65 = vpack.c.bf16 %v42, %v41
    %v66 = vpack.c.bf16 %v44, %v43
    %v67 = vpack.c.bf16 %v46, %v45
    %v68 = vpack.c.bf16 %v48, %v47
    %v69 = vpack.c.bf16 %v50, %v49
    %v70 = vpack.c.bf16 %v52, %v51
    %v71 = vpack.c.bf16 %v54, %v53
    %v72 = vpack.c.bf16 %v56, %v55
    %v73 = vld [vmem:[%s1] sm:$0xf]
    %v74 = vld [vmem:[%s5] sm:$0x1]
    %v75 = vperm.slane %v74, 0
    %vm76 = vcmask 64512
    %v78 = vsel %vm76, %v57, 0
    %v81 = vsel %vm76, %v58, 0
    %v84 = vsel %vm76, %v59, 0
    %v87 = vsel %vm76, %v60, 0
    %v90 = vsel %vm76, %v61, 0
    %v93 = vsel %vm76, %v62, 0
    %v96 = vsel %vm76, %v63, 0
    %v99 = vsel %vm76, %v64, 0
    %v102 = vsel %vm76, %v65, 0
    %v105 = vsel %vm76, %v66, 0
    %v108 = vsel %vm76, %v67, 0
    %v111 = vsel %vm76, %v68, 0
    %v114 = vsel %vm76, %v69, 0
    %v117 = vsel %vm76, %v70, 0
    %v120 = vsel %vm76, %v71, 0
    %v123 = vsel %vm76, %v72, 0
    %vm125 = vcmask 1043456
    %v127 = vsel %vm125, %v73, 0
    %129 = vmatpush.bf16.msra.mxu0 0
    %130 = vmatpush.bf16.msra.mxu0 0
    %131 = vmatpush.bf16.msra.mxu0 0
    %132 = vmatpush.bf16.msra.mxu0 0
    %133 = vmatpush.bf16.msra.mxu0 0
    %134 = vmatpush.bf16.msra.mxu0 0
    %135 = vmatpush.bf16.msra.mxu0 0
    %136 = vmatpush.bf16.msra.mxu0 %v127
    %137 = vmatmul.bf16.gmra.mxu0 %v78
    %v138 = vpop.f32.mrf.mxu0
    %v139 = vadd.f32 %v75, %v138
    %v140 = vpop.f32.mrf.mxu0
    %v141 = vadd.f32 %v75, %v140
    %142 = vmatmul.bf16.gmra.mxu0 %v81
    %v143 = vpop.f32.mrf.mxu0
    %v144 = vadd.f32 %v75, %v143
    %v145 = vpop.f32.mrf.mxu0
    %v146 = vadd.f32 %v75, %v145
    %147 = vmatmul.bf16.gmra.mxu0 %v84
    %v148 = vpop.f32.mrf.mxu0
    %v149 = vadd.f32 %v75, %v148
    %v150 = vpop.f32.mrf.mxu0
    %v151 = vadd.f32 %v75, %v150
    %152 = vmatmul.bf16.gmra.mxu0 %v87
    %v153 = vpop.f32.mrf.mxu0
    %v154 = vadd.f32 %v75, %v153
    %v155 = vpop.f32.mrf.mxu0
    %v156 = vadd.f32 %v75, %v155
    %157 = vmatmul.bf16.gmra.mxu0 %v90
    %v158 = vpop.f32.mrf.mxu0
    %v159 = vadd.f32 %v75, %v158
    %v160 = vpop.f32.mrf.mxu0
    %v161 = vadd.f32 %v75, %v160
    %162 = vmatmul.bf16.gmra.mxu0 %v93
    %v163 = vpop.f32.mrf.mxu0
    %v164 = vadd.f32 %v75, %v163
    %v165 = vpop.f32.mrf.mxu0
    %v166 = vadd.f32 %v75, %v165
    %167 = vmatmul.bf16.gmra.mxu0 %v96
    %v168 = vpop.f32.mrf.mxu0
    %v169 = vadd.f32 %v75, %v168
    %v170 = vpop.f32.mrf.mxu0
    %v171 = vadd.f32 %v75, %v170
    %172 = vmatmul.bf16.gmra.mxu0 %v99
    %v173 = vpop.f32.mrf.mxu0
    %v174 = vadd.f32 %v75, %v173
    %v175 = vpop.f32.mrf.mxu0
    %v176 = vadd.f32 %v75, %v175
    %177 = vmatmul.bf16.gmra.mxu0 %v102
    %v178 = vpop.f32.mrf.mxu0
    %v179 = vadd.f32 %v75, %v178
    %v180 = vpop.f32.mrf.mxu0
    %v181 = vadd.f32 %v75, %v180
    %182 = vmatmul.bf16.gmra.mxu0 %v105
    %v183 = vpop.f32.mrf.mxu0
    %v184 = vadd.f32 %v75, %v183
    %v185 = vpop.f32.mrf.mxu0
    %v186 = vadd.f32 %v75, %v185
    %187 = vmatmul.bf16.gmra.mxu0 %v108
    %v188 = vpop.f32.mrf.mxu0
    %v189 = vadd.f32 %v75, %v188
    %v190 = vpop.f32.mrf.mxu0
    %v191 = vadd.f32 %v75, %v190
    %192 = vmatmul.bf16.gmra.mxu0 %v111
    %v193 = vpop.f32.mrf.mxu0
    %v194 = vadd.f32 %v75, %v193
    %v195 = vpop.f32.mrf.mxu0
    %v196 = vadd.f32 %v75, %v195
    %197 = vmatmul.bf16.gmra.mxu0 %v114
    %v198 = vpop.f32.mrf.mxu0
    %v199 = vadd.f32 %v75, %v198
    %v200 = vpop.f32.mrf.mxu0
    %v201 = vadd.f32 %v75, %v200
    %202 = vmatmul.bf16.gmra.mxu0 %v117
    %v203 = vpop.f32.mrf.mxu0
    %v204 = vadd.f32 %v75, %v203
    %v205 = vpop.f32.mrf.mxu0
    %v206 = vadd.f32 %v75, %v205
    %207 = vmatmul.bf16.gmra.mxu0 %v120
    %v208 = vpop.f32.mrf.mxu0
    %v209 = vadd.f32 %v75, %v208
    %v210 = vpop.f32.mrf.mxu0
    %v211 = vadd.f32 %v75, %v210
    %212 = vmatmul.bf16.gmra.mxu0 %v123
    %v213 = vpop.f32.mrf.mxu0
    %v214 = vadd.f32 %v75, %v213
    %v215 = vpop.f32.mrf.mxu0
    %v216 = vadd.f32 %v75, %v215
    %217 = vdwg.mxu0
    %v218 = vmax.f32 %v139, 0.0
    %v219 = vmax.f32 %v141, 0.0
    %v220 = vmax.f32 %v144, 0.0
    %v221 = vmax.f32 %v146, 0.0
    %v222 = vmax.f32 %v149, 0.0
    %v223 = vmax.f32 %v151, 0.0
    %v224 = vmax.f32 %v154, 0.0
    %v225 = vmax.f32 %v156, 0.0
    %v226 = vmax.f32 %v159, 0.0
    %v227 = vmax.f32 %v161, 0.0
    %v228 = vmax.f32 %v164, 0.0
    %v229 = vmax.f32 %v166, 0.0
    %v230 = vmax.f32 %v169, 0.0
    %v231 = vmax.f32 %v171, 0.0
    %v232 = vmax.f32 %v174, 0.0
    %v233 = vmax.f32 %v176, 0.0
    %v234 = vmax.f32 %v179, 0.0
    %v235 = vmax.f32 %v181, 0.0
    %v236 = vmax.f32 %v184, 0.0
    %v237 = vmax.f32 %v186, 0.0
    %v238 = vmax.f32 %v189, 0.0
    %v239 = vmax.f32 %v191, 0.0
    %v240 = vmax.f32 %v194, 0.0
    %v241 = vmax.f32 %v196, 0.0
    %v242 = vmax.f32 %v199, 0.0
    %v243 = vmax.f32 %v201, 0.0
    %v244 = vmax.f32 %v204, 0.0
    %v245 = vmax.f32 %v206, 0.0
    %v246 = vmax.f32 %v209, 0.0
    %v247 = vmax.f32 %v211, 0.0
    %v248 = vmax.f32 %v214, 0.0
    %v249 = vmax.f32 %v216, 0.0
    %v250 = vmax.f32 %v218, %v234
    %v251 = vmax.f32 %v219, %v235
    %v252 = vmax.f32 %v220, %v236
    %v253 = vmax.f32 %v221, %v237
    %v254 = vmax.f32 %v222, %v238
    %v255 = vmax.f32 %v223, %v239
    %v256 = vmax.f32 %v224, %v240
    %v257 = vmax.f32 %v225, %v241
    %v258 = vmax.f32 %v226, %v242
    %v259 = vmax.f32 %v227, %v243
    %v260 = vmax.f32 %v228, %v244
    %v261 = vmax.f32 %v229, %v245
    %v262 = vmax.f32 %v230, %v246
    %v263 = vmax.f32 %v231, %v247
    %v264 = vmax.f32 %v232, %v248
    %v265 = vmax.f32 %v233, %v249
    %282 = vrot.lane.b32.xlu0 0.0, 32
    %v283 = vpop.permute.xlu0 %282
    %284 = vrot.lane.b32.xlu0 %v250, 32
    %v285 = vpop.permute.xlu0 %284
    %286 = vrot.lane.b32.xlu0 %v251, 32
    %v287 = vpop.permute.xlu0 %286
    %288 = vrot.lane.b32.xlu0 %v252, 32
    %v289 = vpop.permute.xlu0 %288
    %290 = vrot.lane.b32.xlu0 %v253, 32
    %v291 = vpop.permute.xlu0 %290
    %292 = vrot.lane.b32.xlu0 %v254, 32
    %v293 = vpop.permute.xlu0 %292
    %294 = vrot.lane.b32.xlu0 %v255, 32
    %v295 = vpop.permute.xlu0 %294
    %296 = vrot.lane.b32.xlu0 %v256, 32
    %v297 = vpop.permute.xlu0 %296
    %298 = vrot.lane.b32.xlu0 %v257, 32
    %v299 = vpop.permute.xlu0 %298
    %300 = vrot.lane.b32.xlu0 %v258, 32
    %v301 = vpop.permute.xlu0 %300
    %302 = vrot.lane.b32.xlu0 %v259, 32
    %v303 = vpop.permute.xlu0 %302
    %304 = vrot.lane.b32.xlu0 %v260, 32
    %v305 = vpop.permute.xlu0 %304
    %306 = vrot.lane.b32.xlu0 %v261, 32
    %v307 = vpop.permute.xlu0 %306
    %308 = vrot.lane.b32.xlu0 %v262, 32
    %v309 = vpop.permute.xlu0 %308
    %310 = vrot.lane.b32.xlu0 %v263, 32
    %v311 = vpop.permute.xlu0 %310
    %312 = vrot.lane.b32.xlu0 %v264, 32
    %v313 = vpop.permute.xlu0 %312
    %331 = vrot.lane.b32.xlu0 %v250, 64
    %v332 = vpop.permute.xlu0 %331
    %333 = vrot.lane.b32.xlu0 %v251, 64
    %v334 = vpop.permute.xlu0 %333
    %335 = vrot.lane.b32.xlu0 %v252, 64
    %v336 = vpop.permute.xlu0 %335
    %337 = vrot.lane.b32.xlu0 %v253, 64
    %v338 = vpop.permute.xlu0 %337
    %339 = vrot.lane.b32.xlu0 %v254, 64
    %v340 = vpop.permute.xlu0 %339
    %341 = vrot.lane.b32.xlu0 %v255, 64
    %v342 = vpop.permute.xlu0 %341
    %343 = vrot.lane.b32.xlu0 %v256, 64
    %v344 = vpop.permute.xlu0 %343
    %345 = vrot.lane.b32.xlu0 %v257, 64
    %v346 = vpop.permute.xlu0 %345
    %347 = vrot.lane.b32.xlu0 %v258, 64
    %v348 = vpop.permute.xlu0 %347
    %349 = vrot.lane.b32.xlu0 %v259, 64
    %v350 = vpop.permute.xlu0 %349
    %351 = vrot.lane.b32.xlu0 %v260, 64
    %v352 = vpop.permute.xlu0 %351
    %353 = vrot.lane.b32.xlu0 %v261, 64
    %v354 = vpop.permute.xlu0 %353
    %355 = vrot.lane.b32.xlu0 %v262, 64
    %v356 = vpop.permute.xlu0 %355
    %357 = vrot.lane.b32.xlu0 %v263, 64
    %v358 = vpop.permute.xlu0 %357
    %359 = vrot.lane.b32.xlu0 %v264, 64
    %v360 = vpop.permute.xlu0 %359
    %361 = vrot.lane.b32.xlu0 %v265, 64
    %v362 = vpop.permute.xlu0 %361
    %379 = vrot.lane.b32.xlu0 %v251, 96
    %v380 = vpop.permute.xlu0 %379
    %381 = vrot.lane.b32.xlu0 %v252, 96
    %v382 = vpop.permute.xlu0 %381
    %383 = vrot.lane.b32.xlu0 %v253, 96
    %v384 = vpop.permute.xlu0 %383
    %385 = vrot.lane.b32.xlu0 %v254, 96
    %v386 = vpop.permute.xlu0 %385
    %387 = vrot.lane.b32.xlu0 %v255, 96
    %v388 = vpop.permute.xlu0 %387
    %389 = vrot.lane.b32.xlu0 %v256, 96
    %v390 = vpop.permute.xlu0 %389
    %391 = vrot.lane.b32.xlu0 %v257, 96
    %v392 = vpop.permute.xlu0 %391
    %393 = vrot.lane.b32.xlu0 %v258, 96
    %v394 = vpop.permute.xlu0 %393
    %395 = vrot.lane.b32.xlu0 %v259, 96
    %v396 = vpop.permute.xlu0 %395
    %397 = vrot.lane.b32.xlu0 %v260, 96
    %v398 = vpop.permute.xlu0 %397
    %399 = vrot.lane.b32.xlu0 %v261, 96
    %v400 = vpop.permute.xlu0 %399
    %401 = vrot.lane.b32.xlu0 %v262, 96
    %v402 = vpop.permute.xlu0 %401
    %403 = vrot.lane.b32.xlu0 %v263, 96
    %v404 = vpop.permute.xlu0 %403
    %405 = vrot.lane.b32.xlu0 %v264, 96
    %v406 = vpop.permute.xlu0 %405
    %407 = vrot.lane.b32.xlu0 %v265, 96
    %v408 = vpop.permute.xlu0 %407
    %409 = vrot.lane.b32.xlu0 0.0, 96
    %v410 = vpop.permute.xlu0 %409
    %vm427 = vcmask 261120
    %v428 = vsel %vm427, 0.0, %v283
    %v429 = vsel %vm427, 0.0, %v285
    %v430 = vsel %vm427, %v250, %v287
    %v431 = vsel %vm427, %v251, %v289
    %v432 = vsel %vm427, %v252, %v291
    %v433 = vsel %vm427, %v253, %v293
    %v434 = vsel %vm427, %v254, %v295
    %v435 = vsel %vm427, %v255, %v297
    %v436 = vsel %vm427, %v256, %v299
    %v437 = vsel %vm427, %v257, %v301
    %v438 = vsel %vm427, %v258, %v303
    %v439 = vsel %vm427, %v259, %v305
    %v440 = vsel %vm427, %v260, %v307
    %v441 = vsel %vm427, %v261, %v309
    %v442 = vsel %vm427, %v262, %v311
    %v443 = vsel %vm427, %v263, %v313
    %vm444 = vcmask 523264
    %v445 = vsel %vm444, %v428, %v332
    %v446 = vsel %vm444, %v429, %v334
    %v447 = vsel %vm444, %v430, %v336
    %v448 = vsel %vm444, %v431, %v338
    %v449 = vsel %vm444, %v432, %v340
    %v450 = vsel %vm444, %v433, %v342
    %v451 = vsel %vm444, %v434, %v344
    %v452 = vsel %vm444, %v435, %v346
    %v453 = vsel %vm444, %v436, %v348
    %v454 = vsel %vm444, %v437, %v350
    %v455 = vsel %vm444, %v438, %v352
    %v456 = vsel %vm444, %v439, %v354
    %v457 = vsel %vm444, %v440, %v356
    %v458 = vsel %vm444, %v441, %v358
    %v459 = vsel %vm444, %v442, %v360
    %v460 = vsel %vm444, %v443, %v362
    %vm461 = vcmask 785408
    %v462 = vsel %vm461, %v445, %v380
    %v463 = vsel %vm461, %v446, %v382
    %v464 = vsel %vm461, %v447, %v384
    %v465 = vsel %vm461, %v448, %v386
    %v466 = vsel %vm461, %v449, %v388
    %v467 = vsel %vm461, %v450, %v390
    %v468 = vsel %vm461, %v451, %v392
    %v469 = vsel %vm461, %v452, %v394
    %v470 = vsel %vm461, %v453, %v396
    %v471 = vsel %vm461, %v454, %v398
    %v472 = vsel %vm461, %v455, %v400
    %v473 = vsel %vm461, %v456, %v402
    %v474 = vsel %vm461, %v457, %v404
    %v475 = vsel %vm461, %v458, %v406
    %v476 = vsel %vm461, %v459, %v408
    %v477 = vsel %vm461, %v460, %v410
    %v478 = vpack.c.bf16 %v463, %v462
    %v479 = vpack.c.bf16 %v253, %v252
    %v480 = vpack.c.bf16 %v465, %v464
    %v481 = vpack.c.bf16 %v255, %v254
    %v482 = vpack.c.bf16 %v467, %v466
    %v483 = vpack.c.bf16 %v257, %v256
    %v484 = vpack.c.bf16 %v469, %v468
    %v485 = vpack.c.bf16 %v259, %v258
    %v486 = vpack.c.bf16 %v471, %v470
    %v487 = vpack.c.bf16 %v261, %v260
    %v488 = vpack.c.bf16 %v473, %v472
    %v489 = vpack.c.bf16 %v263, %v262
    %v490 = vpack.c.bf16 %v475, %v474
    %v491 = vpack.c.bf16 %v265, %v264
    %v492 = vpack.c.bf16 %v477, %v476
    %v493 = vpack.c.bf16 0.0, 0.0
    %v494 = vld [vmem:[%s2] sm:$0xf]
    %v495 = vld [vmem:[%s2 + $0x4] sm:$0xf]
    %v496 = vld [vmem:[%s2 + $0x8] sm:$0xf]
    %v497 = vld [vmem:[%s2 + $0xc] sm:$0xf]
    %v498 = vld [vmem:[%s2 + $0x10] sm:$0xf]
    %v499 = vld [vmem:[%s2 + $0x14] sm:$0xf]
    %v500 = vld [vmem:[%s2 + $0x18] sm:$0xf]
    %v501 = vld [vmem:[%s2 + $0x1c] sm:$0xf]
    %v502 = vld [vmem:[%s2 + $0x20] sm:$0xf]
    %v503 = vld [vmem:[%s2 + $0x24] sm:$0xf]
    %v504 = vld [vmem:[%s2 + $0x28] sm:$0xf]
    %v505 = vld [vmem:[%s2 + $0x2c] sm:$0xf]
    %v506 = vld [vmem:[%s2 + $0x30] sm:$0xf]
    %v507 = vld [vmem:[%s2 + $0x34] sm:$0xf]
    %v508 = vld [vmem:[%s2 + $0x38] sm:$0xf]
    %v509 = vld [vmem:[%s2 + $0x3c] sm:$0xf]
    %v510 = vld [vmem:[%s2 + $0x40] sm:$0xf]
    %v511 = vld [vmem:[%s2 + $0x44] sm:$0xf]
    %v512 = vld [vmem:[%s2 + $0x48] sm:$0xf]
    %v513 = vld [vmem:[%s2 + $0x4c] sm:$0xf]
    %v514 = vld [vmem:[%s5 + $0x1] sm:$0x1]
    %v515 = vperm.slane %v514, 0
    %v536 = vunpack.c.l.b16 %v494
    %v537 = vunpack.c.l.b16 %v495
    %v538 = vunpack.c.l.b16 %v496
    %v539 = vunpack.c.l.b16 %v497
    %v540 = vunpack.c.l.b16 %v498
    %v541 = vunpack.c.l.b16 %v499
    %v542 = vunpack.c.l.b16 %v500
    %v543 = vunpack.c.l.b16 %v501
    %v544 = vunpack.c.l.b16 %v502
    %v545 = vunpack.c.l.b16 %v503
    %v546 = vunpack.c.l.b16 %v504
    %v547 = vunpack.c.l.b16 %v505
    %v548 = vunpack.c.l.b16 %v506
    %v549 = vunpack.c.l.b16 %v507
    %v550 = vunpack.c.l.b16 %v508
    %v551 = vunpack.c.l.b16 %v509
    %v552 = vunpack.c.l.b16 %v510
    %v553 = vunpack.c.l.b16 %v511
    %v554 = vunpack.c.l.b16 %v512
    %v555 = vunpack.c.l.b16 %v513
    %v556 = vpack.c.b16 %v537, %v536
    %v557 = vpack.c.b16 %v539, %v538
    %v558 = vpack.c.b16 %v541, %v540
    %v559 = vpack.c.b16 %v543, %v542
    %v560 = vpack.c.b16 %v545, %v544
    %v561 = vpack.c.b16 %v547, %v546
    %v562 = vpack.c.b16 %v549, %v548
    %v563 = vpack.c.b16 %v551, %v550
    %v564 = vpack.c.b16 %v553, %v552
    %v565 = vpack.c.b16 %v555, %v554
    %v577 = vsel %vm427, %v479, 0
    %v580 = vsel %vm427, %v481, 0
    %v583 = vsel %vm427, %v483, 0
    %v586 = vsel %vm427, %v485, 0
    %v589 = vsel %vm427, %v487, 0
    %v592 = vsel %vm427, %v489, 0
    %v595 = vsel %vm427, %v491, 0
    %v598 = vsel %vm427, %v493, 0
    %600 = vmatpush.bf16.msra.mxu0 %v563
    %601 = vmatpush.bf16.msra.mxu0 %v562
    %602 = vmatpush.bf16.msra.mxu0 %v561
    %603 = vmatpush.bf16.msra.mxu0 %v560
    %604 = vmatpush.bf16.msra.mxu0 %v559
    %605 = vmatpush.bf16.msra.mxu0 %v558
    %606 = vmatpush.bf16.msra.mxu0 %v557
    %607 = vmatpush.bf16.msra.mxu0 %v556
    %608 = vmatmul.bf16.gmra.mxu0 %v478
    %v609 = vpop.f32.mrf.mxu0
    %v610 = vadd.f32 %v515, %v609
    %v611 = vpop.f32.mrf.mxu0
    %v612 = vadd.f32 %v515, %v611
    %613 = vmatmul.bf16.gmra.mxu0 %v480
    %v614 = vpop.f32.mrf.mxu0
    %v615 = vadd.f32 %v515, %v614
    %v616 = vpop.f32.mrf.mxu0
    %v617 = vadd.f32 %v515, %v616
    %618 = vmatmul.bf16.gmra.mxu0 %v482
    %v619 = vpop.f32.mrf.mxu0
    %v620 = vadd.f32 %v515, %v619
    %v621 = vpop.f32.mrf.mxu0
    %v622 = vadd.f32 %v515, %v621
    %623 = vmatmul.bf16.gmra.mxu0 %v484
    %v624 = vpop.f32.mrf.mxu0
    %v625 = vadd.f32 %v515, %v624
    %v626 = vpop.f32.mrf.mxu0
    %v627 = vadd.f32 %v515, %v626
    %628 = vmatmul.bf16.gmra.mxu0 %v486
    %v629 = vpop.f32.mrf.mxu0
    %v630 = vadd.f32 %v515, %v629
    %v631 = vpop.f32.mrf.mxu0
    %v632 = vadd.f32 %v515, %v631
    %633 = vmatmul.bf16.gmra.mxu0 %v488
    %v634 = vpop.f32.mrf.mxu0
    %v635 = vadd.f32 %v515, %v634
    %v636 = vpop.f32.mrf.mxu0
    %v637 = vadd.f32 %v515, %v636
    %638 = vmatmul.bf16.gmra.mxu0 %v490
    %v639 = vpop.f32.mrf.mxu0
    %v640 = vadd.f32 %v515, %v639
    %v641 = vpop.f32.mrf.mxu0
    %v642 = vadd.f32 %v515, %v641
    %643 = vmatmul.bf16.gmra.mxu0 %v492
    %v644 = vpop.f32.mrf.mxu0
    %v645 = vadd.f32 %v515, %v644
    %v646 = vpop.f32.mrf.mxu0
    %v647 = vadd.f32 %v515, %v646
    %648 = vdwg.mxu0
    %649 = vmatpush.bf16.msra.mxu0 0
    %650 = vmatpush.bf16.msra.mxu0 0
    %651 = vmatpush.bf16.msra.mxu0 0
    %652 = vmatpush.bf16.msra.mxu0 0
    %653 = vmatpush.bf16.msra.mxu0 0
    %654 = vmatpush.bf16.msra.mxu0 0
    %655 = vmatpush.bf16.msra.mxu0 %v565
    %656 = vmatpush.bf16.msra.mxu0 %v564
    %657 = vmatmul.bf16.gmra.mxu0 %v577
    %v658 = vpop.f32.mrf.mxu0
    %v659 = vadd.f32 %v610, %v658
    %v660 = vpop.f32.mrf.mxu0
    %v661 = vadd.f32 %v612, %v660
    %662 = vmatmul.bf16.gmra.mxu0 %v580
    %v663 = vpop.f32.mrf.mxu0
    %v664 = vadd.f32 %v615, %v663
    %v665 = vpop.f32.mrf.mxu0
    %v666 = vadd.f32 %v617, %v665
    %667 = vmatmul.bf16.gmra.mxu0 %v583
    %v668 = vpop.f32.mrf.mxu0
    %v669 = vadd.f32 %v620, %v668
    %v670 = vpop.f32.mrf.mxu0
    %v671 = vadd.f32 %v622, %v670
    %672 = vmatmul.bf16.gmra.mxu0 %v586
    %v673 = vpop.f32.mrf.mxu0
    %v674 = vadd.f32 %v625, %v673
    %v675 = vpop.f32.mrf.mxu0
    %v676 = vadd.f32 %v627, %v675
    %677 = vmatmul.bf16.gmra.mxu0 %v589
    %v678 = vpop.f32.mrf.mxu0
    %v679 = vadd.f32 %v630, %v678
    %v680 = vpop.f32.mrf.mxu0
    %v681 = vadd.f32 %v632, %v680
    %682 = vmatmul.bf16.gmra.mxu0 %v592
    %v683 = vpop.f32.mrf.mxu0
    %v684 = vadd.f32 %v635, %v683
    %v685 = vpop.f32.mrf.mxu0
    %v686 = vadd.f32 %v637, %v685
    %687 = vmatmul.bf16.gmra.mxu0 %v595
    %v688 = vpop.f32.mrf.mxu0
    %v689 = vadd.f32 %v640, %v688
    %v690 = vpop.f32.mrf.mxu0
    %v691 = vadd.f32 %v642, %v690
    %692 = vmatmul.bf16.gmra.mxu0 %v598
    %v693 = vpop.f32.mrf.mxu0
    %v694 = vadd.f32 %v645, %v693
    %v695 = vpop.f32.mrf.mxu0
    %v696 = vadd.f32 %v647, %v695
    %697 = vdwg.mxu0
    %v698 = vmax.f32 %v659, 0.0
    %v699 = vmax.f32 %v661, 0.0
    %v700 = vmax.f32 %v664, 0.0
    %v701 = vmax.f32 %v666, 0.0
    %v702 = vmax.f32 %v669, 0.0
    %v703 = vmax.f32 %v671, 0.0
    %v704 = vmax.f32 %v674, 0.0
    %v705 = vmax.f32 %v676, 0.0
    %v706 = vmax.f32 %v679, 0.0
    %v707 = vmax.f32 %v681, 0.0
    %v708 = vmax.f32 %v684, 0.0
    %v709 = vmax.f32 %v686, 0.0
    %v710 = vmax.f32 %v689, 0.0
    %v711 = vmax.f32 %v691, 0.0
    %v712 = vmax.f32 %v694, 0.0
    %v713 = vmax.f32 %v696, 0.0
    %v714 = vmax.f32 %v698, %v699
    %v715 = vmax.f32 %v700, %v701
    %v716 = vmax.f32 %v702, %v703
    %v717 = vmax.f32 %v704, %v705
    %v718 = vmax.f32 %v706, %v707
    %v719 = vmax.f32 %v708, %v709
    %v720 = vmax.f32 %v710, %v711
    %v721 = vmax.f32 %v712, %v713
    %723 = vrot.lane.b32.xlu0 %v715, 64
    %v724 = vpop.permute.xlu0 %723
    %727 = vrot.lane.b32.xlu0 %v717, 64
    %v728 = vpop.permute.xlu0 %727
    %731 = vrot.lane.b32.xlu0 %v719, 64
    %v732 = vpop.permute.xlu0 %731
    %735 = vrot.lane.b32.xlu0 %v721, 64
    %v736 = vpop.permute.xlu0 %735
    %v738 = vsel %vm444, %v714, %v724
    %v739 = vsel %vm444, %v716, %v728
    %v740 = vsel %vm444, %v718, %v732
    %v741 = vsel %vm444, %v720, %v736
    %v742 = vpack.c.bf16 %v738, %v738
    %v743 = vpack.c.bf16 %v739, %v739
    %v744 = vpack.c.bf16 %v740, %v740
    %v745 = vpack.c.bf16 %v741, %v741
    %v746 = vld [vmem:[%s3] sm:$0xf]
    %v747 = vld [vmem:[%s3 + $0x4] sm:$0xf]
    %v748 = vld [vmem:[%s3 + $0x8] sm:$0xf]
    %v749 = vld [vmem:[%s3 + $0xc] sm:$0xf]
    %v750 = vld [vmem:[%s3 + $0x10] sm:$0xf]
    %v751 = vld [vmem:[%s3 + $0x14] sm:$0xf]
    %v752 = vld [vmem:[%s3 + $0x18] sm:$0xf]
    %v753 = vld [vmem:[%s3 + $0x1c] sm:$0xf]
    %v754 = vld [vmem:[%s3 + $0x20] sm:$0xf]
    %v755 = vld [vmem:[%s3 + $0x24] sm:$0xf]
    %v756 = vld [vmem:[%s3 + $0x28] sm:$0xf]
    %v757 = vld [vmem:[%s3 + $0x2c] sm:$0xf]
    %v758 = vld [vmem:[%s3 + $0x30] sm:$0xf]
    %v759 = vld [vmem:[%s3 + $0x34] sm:$0xf]
    %v760 = vld [vmem:[%s3 + $0x38] sm:$0xf]
    %v761 = vld [vmem:[%s3 + $0x3c] sm:$0xf]
    %v762 = vld [vmem:[%s3 + $0x40] sm:$0xf]
    %v763 = vld [vmem:[%s3 + $0x44] sm:$0xf]
    %v764 = vld [vmem:[%s3 + $0x48] sm:$0xf]
    %v765 = vld [vmem:[%s3 + $0x4c] sm:$0xf]
    %v766 = vld [vmem:[%s3 + $0x50] sm:$0xf]
    %v767 = vld [vmem:[%s3 + $0x54] sm:$0xf]
    %v768 = vld [vmem:[%s3 + $0x58] sm:$0xf]
    %v769 = vld [vmem:[%s3 + $0x5c] sm:$0xf]
    %v770 = vld [vmem:[%s3 + $0x60] sm:$0xf]
    %v771 = vld [vmem:[%s3 + $0x64] sm:$0xf]
    %v772 = vld [vmem:[%s3 + $0x68] sm:$0xf]
    %v773 = vld [vmem:[%s3 + $0x6c] sm:$0xf]
    %v774 = vld [vmem:[%s3 + $0x70] sm:$0xf]
    %v775 = vld [vmem:[%s3 + $0x74] sm:$0xf]
    %v776 = vld [vmem:[%s3 + $0x78] sm:$0xf]
    %v777 = vld [vmem:[%s3 + $0x7c] sm:$0xf]
    %v778 = vld [vmem:[%s3 + $0x80] sm:$0xf]
    %v779 = vld [vmem:[%s3 + $0x84] sm:$0xf]
    %v780 = vld [vmem:[%s3 + $0x88] sm:$0xf]
    %v781 = vld [vmem:[%s3 + $0x8c] sm:$0xf]
    %v782 = vld [vmem:[%s3 + $0x90] sm:$0xf]
    %v783 = vld [vmem:[%s3 + $0x94] sm:$0xf]
    %v784 = vld [vmem:[%s3 + $0x98] sm:$0xf]
    %v785 = vld [vmem:[%s3 + $0x9c] sm:$0xf]
    %v786 = vld [vmem:[%s3 + $0xa0] sm:$0xf]
    %v787 = vld [vmem:[%s3 + $0xa4] sm:$0xf]
    %v788 = vld [vmem:[%s3 + $0xa8] sm:$0xf]
    %v789 = vld [vmem:[%s3 + $0xac] sm:$0xf]
    %v790 = vld [vmem:[%s3 + $0xb0] sm:$0xf]
    %v791 = vld [vmem:[%s3 + $0xb4] sm:$0xf]
    %v792 = vld [vmem:[%s3 + $0xb8] sm:$0xf]
    %v793 = vld [vmem:[%s3 + $0xbc] sm:$0xf]
    %v794 = vld [vmem:[%s3 + $0xc0] sm:$0xf]
    %v795 = vld [vmem:[%s3 + $0xc4] sm:$0xf]
    %v796 = vld [vmem:[%s3 + $0xc8] sm:$0xf]
    %v797 = vld [vmem:[%s3 + $0xcc] sm:$0xf]
    %v798 = vld [vmem:[%s3 + $0xd0] sm:$0xf]
    %v799 = vld [vmem:[%s3 + $0xd4] sm:$0xf]
    %v800 = vld [vmem:[%s3 + $0xd8] sm:$0xf]
    %v801 = vld [vmem:[%s3 + $0xdc] sm:$0xf]
    %v802 = vld [vmem:[%s3 + $0xe0] sm:$0xf]
    %v803 = vld [vmem:[%s3 + $0xe4] sm:$0xf]
    %v804 = vld [vmem:[%s3 + $0xe8] sm:$0xf]
    %v805 = vld [vmem:[%s3 + $0xec] sm:$0xf]
    %v806 = vld [vmem:[%s3 + $0xf0] sm:$0xf]
    %v807 = vld [vmem:[%s3 + $0xf4] sm:$0xf]
    %v808 = vld [vmem:[%s3 + $0xf8] sm:$0xf]
    %v809 = vld [vmem:[%s3 + $0xfc] sm:$0xf]
    %v810 = vld [vmem:[%s5 + $0x2] sm:$0x1]
    %v811 = vperm.slane %v810, 0
    %v876 = vunpack.c.l.b16 %v746
    %v877 = vunpack.c.l.b16 %v747
    %v878 = vunpack.c.l.b16 %v748
    %v879 = vunpack.c.l.b16 %v749
    %v880 = vunpack.c.l.b16 %v750
    %v881 = vunpack.c.l.b16 %v751
    %v882 = vunpack.c.l.b16 %v752
    %v883 = vunpack.c.l.b16 %v753
    %v884 = vunpack.c.l.b16 %v754
    %v885 = vunpack.c.l.b16 %v755
    %v886 = vunpack.c.l.b16 %v756
    %v887 = vunpack.c.l.b16 %v757
    %v888 = vunpack.c.l.b16 %v758
    %v889 = vunpack.c.l.b16 %v759
    %v890 = vunpack.c.l.b16 %v760
    %v891 = vunpack.c.l.b16 %v761
    %v892 = vunpack.c.l.b16 %v762
    %v893 = vunpack.c.l.b16 %v763
    %v894 = vunpack.c.l.b16 %v764
    %v895 = vunpack.c.l.b16 %v765
    %v896 = vunpack.c.l.b16 %v766
    %v897 = vunpack.c.l.b16 %v767
    %v898 = vunpack.c.l.b16 %v768
    %v899 = vunpack.c.l.b16 %v769
    %v900 = vunpack.c.l.b16 %v770
    %v901 = vunpack.c.l.b16 %v771
    %v902 = vunpack.c.l.b16 %v772
    %v903 = vunpack.c.l.b16 %v773
    %v904 = vunpack.c.l.b16 %v774
    %v905 = vunpack.c.l.b16 %v775
    %v906 = vunpack.c.l.b16 %v776
    %v907 = vunpack.c.l.b16 %v777
    %v908 = vunpack.c.l.b16 %v778
    %v909 = vunpack.c.l.b16 %v779
    %v910 = vunpack.c.l.b16 %v780
    %v911 = vunpack.c.l.b16 %v781
    %v912 = vunpack.c.l.b16 %v782
    %v913 = vunpack.c.l.b16 %v783
    %v914 = vunpack.c.l.b16 %v784
    %v915 = vunpack.c.l.b16 %v785
    %v916 = vunpack.c.l.b16 %v786
    %v917 = vunpack.c.l.b16 %v787
    %v918 = vunpack.c.l.b16 %v788
    %v919 = vunpack.c.l.b16 %v789
    %v920 = vunpack.c.l.b16 %v790
    %v921 = vunpack.c.l.b16 %v791
    %v922 = vunpack.c.l.b16 %v792
    %v923 = vunpack.c.l.b16 %v793
    %v924 = vunpack.c.l.b16 %v794
    %v925 = vunpack.c.l.b16 %v795
    %v926 = vunpack.c.l.b16 %v796
    %v927 = vunpack.c.l.b16 %v797
    %v928 = vunpack.c.l.b16 %v798
    %v929 = vunpack.c.l.b16 %v799
    %v930 = vunpack.c.l.b16 %v800
    %v931 = vunpack.c.l.b16 %v801
    %v932 = vunpack.c.l.b16 %v802
    %v933 = vunpack.c.l.b16 %v803
    %v934 = vunpack.c.l.b16 %v804
    %v935 = vunpack.c.l.b16 %v805
    %v936 = vunpack.c.l.b16 %v806
    %v937 = vunpack.c.l.b16 %v807
    %v938 = vunpack.c.l.b16 %v808
    %v939 = vunpack.c.l.b16 %v809
    %v940 = vpack.c.b16 %v877, %v876
    %v941 = vpack.c.b16 %v879, %v878
    %v942 = vpack.c.b16 %v881, %v880
    %v943 = vpack.c.b16 %v883, %v882
    %v944 = vpack.c.b16 %v885, %v884
    %v945 = vpack.c.b16 %v887, %v886
    %v946 = vpack.c.b16 %v889, %v888
    %v947 = vpack.c.b16 %v891, %v890
    %v948 = vpack.c.b16 %v893, %v892
    %v949 = vpack.c.b16 %v895, %v894
    %v950 = vpack.c.b16 %v897, %v896
    %v951 = vpack.c.b16 %v899, %v898
    %v952 = vpack.c.b16 %v901, %v900
    %v953 = vpack.c.b16 %v903, %v902
    %v954 = vpack.c.b16 %v905, %v904
    %v955 = vpack.c.b16 %v907, %v906
    %v956 = vpack.c.b16 %v909, %v908
    %v957 = vpack.c.b16 %v911, %v910
    %v958 = vpack.c.b16 %v913, %v912
    %v959 = vpack.c.b16 %v915, %v914
    %v960 = vpack.c.b16 %v917, %v916
    %v961 = vpack.c.b16 %v919, %v918
    %v962 = vpack.c.b16 %v921, %v920
    %v963 = vpack.c.b16 %v923, %v922
    %v964 = vpack.c.b16 %v925, %v924
    %v965 = vpack.c.b16 %v927, %v926
    %v966 = vpack.c.b16 %v929, %v928
    %v967 = vpack.c.b16 %v931, %v930
    %v968 = vpack.c.b16 %v933, %v932
    %v969 = vpack.c.b16 %v935, %v934
    %v970 = vpack.c.b16 %v937, %v936
    %v971 = vpack.c.b16 %v939, %v938
    %1004 = vmatpush.bf16.msra.mxu0 %v947
    %1005 = vmatpush.bf16.msra.mxu0 %v946
    %1006 = vmatpush.bf16.msra.mxu0 %v945
    %1007 = vmatpush.bf16.msra.mxu0 %v944
    %1008 = vmatpush.bf16.msra.mxu0 %v943
    %1009 = vmatpush.bf16.msra.mxu0 %v942
    %1010 = vmatpush.bf16.msra.mxu0 %v941
    %1011 = vmatpush.bf16.msra.mxu0 %v940
    %1012 = vmatmul.bf16.gmra.mxu0 %v742
    %v1013 = vpop.f32.mrf.mxu0
    %v1014 = vadd.f32 %v811, %v1013
    %v1015 = vpop.f32.mrf.mxu0
    %1016 = vdwg.mxu0
    %1017 = vmatpush.bf16.msra.mxu0 %v955
    %1018 = vmatpush.bf16.msra.mxu0 %v954
    %1019 = vmatpush.bf16.msra.mxu0 %v953
    %1020 = vmatpush.bf16.msra.mxu0 %v952
    %1021 = vmatpush.bf16.msra.mxu0 %v951
    %1022 = vmatpush.bf16.msra.mxu0 %v950
    %1023 = vmatpush.bf16.msra.mxu0 %v949
    %1024 = vmatpush.bf16.msra.mxu0 %v948
    %1025 = vmatmul.bf16.gmra.mxu0 %v743
    %v1026 = vpop.f32.mrf.mxu0
    %v1027 = vadd.f32 %v1014, %v1026
    %v1028 = vpop.f32.mrf.mxu0
    %1029 = vdwg.mxu0
    %1030 = vmatpush.bf16.msra.mxu0 %v963
    %1031 = vmatpush.bf16.msra.mxu0 %v962
    %1032 = vmatpush.bf16.msra.mxu0 %v961
    %1033 = vmatpush.bf16.msra.mxu0 %v960
    %1034 = vmatpush.bf16.msra.mxu0 %v959
    %1035 = vmatpush.bf16.msra.mxu0 %v958
    %1036 = vmatpush.bf16.msra.mxu0 %v957
    %1037 = vmatpush.bf16.msra.mxu0 %v956
    %1038 = vmatmul.bf16.gmra.mxu0 %v744
    %v1039 = vpop.f32.mrf.mxu0
    %v1040 = vadd.f32 %v1027, %v1039
    %v1041 = vpop.f32.mrf.mxu0
    %1042 = vdwg.mxu0
    %1043 = vmatpush.bf16.msra.mxu0 %v971
    %1044 = vmatpush.bf16.msra.mxu0 %v970
    %1045 = vmatpush.bf16.msra.mxu0 %v969
    %1046 = vmatpush.bf16.msra.mxu0 %v968
    %1047 = vmatpush.bf16.msra.mxu0 %v967
    %1048 = vmatpush.bf16.msra.mxu0 %v966
    %1049 = vmatpush.bf16.msra.mxu0 %v965
    %1050 = vmatpush.bf16.msra.mxu0 %v964
    %1051 = vmatmul.bf16.gmra.mxu0 %v745
    %v1052 = vpop.f32.mrf.mxu0
    %v1053 = vadd.f32 %v1040, %v1052
    %v1054 = vpop.f32.mrf.mxu0
    %1055 = vdwg.mxu0
    %v1056 = vmax.f32 %v1053, 0.0
    %v1057 = vpack.c.bf16 %v1056, %v1056
    %v1058 = vld [vmem:[%s4] sm:$0xf]
    %v1059 = vld [vmem:[%s4 + $0x4] sm:$0xf]
    %v1060 = vld [vmem:[%s4 + $0x8] sm:$0xf]
    %v1061 = vld [vmem:[%s4 + $0xc] sm:$0xf]
    %v1062 = vld [vmem:[%s4 + $0x10] sm:$0xf]
    %v1063 = vld [vmem:[%s4 + $0x14] sm:$0xf]
    %v1064 = vld [vmem:[%s4 + $0x18] sm:$0xf]
    %v1065 = vld [vmem:[%s4 + $0x1c] sm:$0xf]
    %v1066 = vld [vmem:[%s4 + $0x20] sm:$0xf]
    %v1067 = vld [vmem:[%s4 + $0x24] sm:$0xf]
    %v1068 = vld [vmem:[%s4 + $0x28] sm:$0xf]
    %v1069 = vld [vmem:[%s4 + $0x2c] sm:$0xf]
    %v1070 = vld [vmem:[%s4 + $0x30] sm:$0xf]
    %v1071 = vld [vmem:[%s4 + $0x34] sm:$0xf]
    %v1072 = vld [vmem:[%s4 + $0x38] sm:$0xf]
    %v1073 = vld [vmem:[%s4 + $0x3c] sm:$0xf]
    %v1074 = vld [vmem:[%s5 + $0x3] sm:$0x1]
    %v1075 = vperm.slane %v1074, 0
    %v1092 = vunpack.c.l.b16 %v1058
    %v1093 = vunpack.c.l.b16 %v1059
    %v1094 = vunpack.c.l.b16 %v1060
    %v1095 = vunpack.c.l.b16 %v1061
    %v1096 = vunpack.c.l.b16 %v1062
    %v1097 = vunpack.c.l.b16 %v1063
    %v1098 = vunpack.c.l.b16 %v1064
    %v1099 = vunpack.c.l.b16 %v1065
    %v1100 = vunpack.c.l.b16 %v1066
    %v1101 = vunpack.c.l.b16 %v1067
    %v1102 = vunpack.c.l.b16 %v1068
    %v1103 = vunpack.c.l.b16 %v1069
    %v1104 = vunpack.c.l.b16 %v1070
    %v1105 = vunpack.c.l.b16 %v1071
    %v1106 = vunpack.c.l.b16 %v1072
    %v1107 = vunpack.c.l.b16 %v1073
    %v1108 = vpack.c.b16 %v1093, %v1092
    %v1109 = vpack.c.b16 %v1095, %v1094
    %v1110 = vpack.c.b16 %v1097, %v1096
    %v1111 = vpack.c.b16 %v1099, %v1098
    %v1112 = vpack.c.b16 %v1101, %v1100
    %v1113 = vpack.c.b16 %v1103, %v1102
    %v1114 = vpack.c.b16 %v1105, %v1104
    %v1115 = vpack.c.b16 %v1107, %v1106
    %1124 = vmatpush.bf16.msra.mxu0 %v1115
    %1125 = vmatpush.bf16.msra.mxu0 %v1114
    %1126 = vmatpush.bf16.msra.mxu0 %v1113
    %1127 = vmatpush.bf16.msra.mxu0 %v1112
    %1128 = vmatpush.bf16.msra.mxu0 %v1111
    %1129 = vmatpush.bf16.msra.mxu0 %v1110
    %1130 = vmatpush.bf16.msra.mxu0 %v1109
    %1131 = vmatpush.bf16.msra.mxu0 %v1108
    %1132 = vmatmul.bf16.gmra.mxu0 %v1057
    %v1133 = vpop.f32.mrf.mxu0
    %v1134 = vadd.f32 %v1075, %v1133
    %v1135 = vpop.f32.mrf.mxu0
    %1136 = vdwg.mxu0
    %1137 = vst [vmem:[#allocation2] sm:$0xff] %v1134
    // Predicated region
    $region26: #{_lambda_.1} parent=1 // pred_check
      _
    $region27: #{_lambda_.1} parent=1 // pred_check_branch
      %1139 = sbr.rel (0) target = $region29
    $region28: #{_lambda_.1} parent=1 // pred_region
      %1141 = vsyncadd [#allocation3], 0
      %s1143 = sshll.u32 [#allocation2], 4
      %s1144 = int_to_ptr.vmem [resolvable:$true] %s1143
      %s1145 = sshll.u32 %s6, 4
      %s1146 = int_to_ptr.hbm [resolvable:$true] %s1145
      %1148 = dma.vmem_to_hbm [thread:$0]  %s1144, 128, %s1146, [#allocation3]
    $region29: #{_lambda_.1} parent=1 // pred_fallthru
      _
    // Predicated region
    $region30: #{_lambda_.1} parent=1 // pred_check
      _
    $region31: #{_lambda_.1} parent=1 // pred_check_branch
      %1150 = sbr.rel (0) target = $region33
    $region32: #{_lambda_.1} parent=1 // pred_region
      %1152 = dma.done [#allocation3], 128
    $region33: #{_lambda_.1} parent=1 // pred_fallthru
      _
    %1153 = vsyncpa [#allocation3], 1

</llo_original>
